<compile_context>
chip_gen: v6e
topology: v6e:2x2x1
jax: 0.10.0
libtpu: 0.0.40
codegen_flags: <defaults>
</compile_context>

<pallas_src>
import jax
import jax.numpy as jnp
from jax.experimental import pallas as pl
from jax.experimental.pallas import tpu as pltpu

NEG_SLOPE = 0.01  # F.leaky_relu default
LANE = 128


def _round_up(x, m):
    return ((x + m - 1) // m) * m


def _leaky_relu(x):
    # 2 VALU ops/element (mul + max) instead of cmp + mul + select.
    return jnp.maximum(x, NEG_SLOPE * x)


def critic_kernel(state_ref, action_ref,
                  w1t_ref, b1_ref,
                  w2st_ref, w2at_ref, b2_ref,
                  w3t_ref, b3_ref,
                  out_ref):
    # fc1: bf16 MXU operands, f32 accumulation; epilogue in bf16.
    acc1 = jnp.dot(state_ref[...].astype(jnp.bfloat16), w1t_ref[...],
                   preferred_element_type=jnp.float32)
    xs = _leaky_relu(acc1.astype(jnp.bfloat16) + b1_ref[...])   # bf16

    # fc2 on the folded concat [xs, action] as a split matmul (exact algebra).
    acc2 = (jnp.dot(xs, w2st_ref[...], preferred_element_type=jnp.float32)
            + jnp.dot(action_ref[...].astype(jnp.bfloat16), w2at_ref[...],
                      preferred_element_type=jnp.float32))
    h = _leaky_relu(acc2.astype(jnp.bfloat16) + b2_ref[...])    # bf16

    # fc3: lane-padded to 128 logits (padded weight/bias columns are zero),
    # f32 bias add for accuracy, single cast to the output dtype.
    out_ref[...] = (jnp.dot(h, w3t_ref[...], preferred_element_type=jnp.float32)
                    + b3_ref[...]).astype(out_ref.dtype)


def prepare_params(params):
    """One-time weight preparation (do NOT call per forward step).

    Transposes, splits W2 into its state/action column blocks, lane-pads the
    output layer to 128 columns (zeros), and casts matmul weights + the fc1/fc2
    biases to bf16 (the fc3 bias stays f32 for the final accumulation).
    """
    fc1_units = params["w1"].shape[0]
    fc3_units = params["w3"].shape[1]
    n_atoms = params["w3"].shape[0]
    n_pad = pl.cdiv(n_atoms, LANE) * LANE

    w1t = params["w1"].T.astype(jnp.bfloat16)                    # (S, fc1)
    w2st = params["w2"][:, :fc1_units].T.astype(jnp.bfloat16)    # (fc1, fc3)
    w2at = params["w2"][:, fc1_units:].T.astype(jnp.bfloat16)    # (A, fc3)
    w3t = jnp.zeros((fc3_units, n_pad), jnp.bfloat16).at[:, :n_atoms].set(
        params["w3"].T.astype(jnp.bfloat16))                     # (fc3, n_pad)
    b1 = params["b1"][None, :].astype(jnp.bfloat16)              # (1, fc1)
    b2 = params["b2"][None, :].astype(jnp.bfloat16)              # (1, fc3)
    b3 = jnp.zeros((1, n_pad), jnp.float32).at[:, :n_atoms].set(
        params["b3"].astype(jnp.float32))                        # (1, n_pad)

    return dict(w1t=w1t, w2st=w2st, w2at=w2at, w3t=w3t,
                b1=b1, b2=b2, b3=b3, n_atoms=int(n_atoms))


def critic_d4pg_forward(state, action, prepped, *, batch_tile=1024,
                        out_dtype=jnp.bfloat16):
    """CriticD4PG forward as one batch-tiled Pallas kernel.

    Returns the lane-padded logits of shape (B, 128) in `out_dtype`; the valid
    atoms are columns [:prepped["n_atoms"]] (the rest are exactly zero).
    Slicing is left to the consumer / downstream op to avoid an extra HBM copy.
    """
    B, S = state.shape
    A = action.shape[1]
    n_pad = prepped["w3t"].shape[1]
    fc1 = prepped["w1t"].shape[1]
    fc3 = prepped["w2st"].shape[1]

    # Batch tile: multiple of 16 (bf16 sublane packing), capped at batch_tile
    # (default 1024 amortizes per-step pipeline overhead), and chosen so that
    # the grid has >=2 steps whenever the batch is splittable (v7x: 2 TCs).
    if B > batch_tile:
        TB = batch_tile
    elif B >= 32:
        TB = _round_up(pl.cdiv(B, 2), 16)     # ~even 2-way split, TB <= B
    elif B >= 16:
        TB = 16
    else:
        TB = _round_up(max(B, 1), 8)
    grid_b = pl.cdiv(B, TB)                   # last block partially masked
    rows = grid_b * TB

    flops = 2 * rows * (S * fc1 + (fc1 + A) * fc3 + fc3 * n_pad)
    weight_bytes = sum(int(prepped[k].size) * prepped[k].dtype.itemsize
                       for k in ("w1t", "w2st", "w2at", "w3t", "b1", "b2", "b3"))
    bytes_accessed = int(B * (S + A) * state.dtype.itemsize
                         + B * n_pad * jnp.dtype(out_dtype).itemsize
                         + weight_bytes)

    batch_spec = lambda n: pl.BlockSpec((TB, n), lambda i: (i, 0))
    const_spec = lambda a: pl.BlockSpec(a.shape, lambda i: (0,) * a.ndim)

    args = (state, action,
            prepped["w1t"], prepped["b1"],
            prepped["w2st"], prepped["w2at"], prepped["b2"],
            prepped["w3t"], prepped["b3"])
    in_specs = [batch_spec(S), batch_spec(A)] + [const_spec(a) for a in args[2:]]

    return pl.pallas_call(
        critic_kernel,
        out_shape=jax.ShapeDtypeStruct((B, n_pad), out_dtype),
        grid=(grid_b,),
        in_specs=in_specs,
        out_specs=pl.BlockSpec((TB, n_pad), lambda i: (i, 0)),
        compiler_params=pltpu.CompilerParams(
            dimension_semantics=("parallel",)),
        cost_estimate=pl.CostEstimate(flops=flops, transcendentals=0,
                                      bytes_accessed=bytes_accessed),
    )(*args)


def init_params(key, state_size, action_size,
                fc1_units=128, fc2_units=128, fc3_units=128, n_atoms=51):
    """Deterministic synthetic init mirroring the module's parameter shapes."""
    ks = jax.random.split(key, 6)

    def uni(k, shape, lim):
        return jax.random.uniform(k, shape, jnp.float32, -lim, lim)

    w1 = uni(ks[0], (fc1_units, state_size), 1.0 / jnp.sqrt(fc1_units))
    b1 = uni(ks[1], (fc1_units,), 1.0 / jnp.sqrt(state_size))
    w2 = uni(ks[2], (fc3_units, fc2_units + action_size), 1.0 / jnp.sqrt(fc3_units))
    b2 = uni(ks[3], (fc3_units,), 1.0 / jnp.sqrt(fc2_units + action_size))
    w3 = uni(ks[4], (n_atoms, fc3_units), 1.0 / jnp.sqrt(n_atoms))
    b3 = uni(ks[5], (n_atoms,), 1.0 / jnp.sqrt(fc3_units))
    return dict(w1=w1, b1=b1, w2=w2, b2=b2, w3=w3, b3=b3)


def reference_forward(state, action, params):
    """Pure-JAX f32 reference of the PyTorch forward (semantic check)."""
    xs = jax.nn.leaky_relu(state @ params["w1"].T + params["b1"], NEG_SLOPE)
    x = jnp.concatenate([xs, action], axis=1)
    x = jax.nn.leaky_relu(x @ params["w2"].T + params["b2"], NEG_SLOPE)
    return x @ params["w3"].T + params["b3"]


def reference_forward_bf16(state, action, params):
    """Reference reproducing the kernel's bf16 rounding points (tight check)."""
    bf, f32 = jnp.bfloat16, jnp.float32
    bfr = lambda a: a.astype(bf).astype(f32)
    fc1 = params["w1"].shape[0]

    acc1 = bfr(state) @ bfr(params["w1"].T)
    xs = _leaky_relu(acc1.astype(bf) + params["b1"].astype(bf)).astype(f32)

    w2s = params["w2"][:, :fc1].T
    w2a = params["w2"][:, fc1:].T
    acc2 = bfr(xs) @ bfr(w2s) + bfr(action) @ bfr(w2a)
    h = _leaky_relu(acc2.astype(bf) + params["b2"].astype(bf)).astype(f32)

    out = bfr(h) @ bfr(params["w3"].T) + params["b3"]
    return out.astype(bf).astype(f32)


if __name__ == "__main__":
    key = jax.random.PRNGKey(0)
    k_state, k_action, k_params = jax.random.split(key, 3)

    batch = 8
    state_size = 16
    action_size = 4

    state = jax.random.normal(k_state, (batch, state_size), jnp.float32)
    action = jax.random.normal(k_action, (batch, action_size), jnp.float32)
    params = init_params(k_params, state_size, action_size)

    prepped = prepare_params(params)                   # one-time weight prep
    out_padded = critic_d4pg_forward(state, action, prepped)
    out_padded = jax.block_until_ready(out_padded)

    n_atoms = prepped["n_atoms"]
    assert out_padded.shape == (batch, 128), out_padded.shape
    assert out_padded.dtype == jnp.bfloat16, out_padded.dtype

    # Consumer-side lazy slice (padded atom columns are exactly zero).
    logits = out_padded[:, :n_atoms].astype(jnp.float32)
    assert logits.shape == (batch, n_atoms), logits.shape

    # Tight check vs. a reference with matched bf16 rounding (verifies the
    # kernel math / concat-fold / lane padding / bf16 epilogue).
    ref_bf16 = reference_forward_bf16(state, action, params)
    err_bf16 = float(jnp.max(jnp.abs(logits - ref_bf16)))
    assert jnp.allclose(logits, ref_bf16, atol=1e-2, rtol=1e-2), err_bf16

    # Looser check vs. the pure-f32 PyTorch-semantics reference.
    ref_f32 = reference_forward(state, action, params)
    err_f32 = float(jnp.max(jnp.abs(logits - ref_f32)))
    assert jnp.allclose(logits, ref_f32, atol=5e-2, rtol=5e-2), err_f32

    print("KERNEL_OK")
</pallas_src>

<mosaic_0001>
module attributes {stable_mosaic.version = 11 : i64} {
  func.func @critic_kernel(%arg0: i32, %arg1: memref<8x16xf32, #tpu.memory_space<vmem>>, %arg2: memref<8x4xf32, #tpu.memory_space<vmem>>, %arg3: memref<16x128xbf16, #tpu.memory_space<vmem>>, %arg4: memref<1x128xbf16, #tpu.memory_space<vmem>>, %arg5: memref<128x128xbf16, #tpu.memory_space<vmem>>, %arg6: memref<4x128xbf16, #tpu.memory_space<vmem>>, %arg7: memref<1x128xbf16, #tpu.memory_space<vmem>>, %arg8: memref<128x128xbf16, #tpu.memory_space<vmem>>, %arg9: memref<1x128xf32, #tpu.memory_space<vmem>>, %arg10: memref<8x128xbf16, #tpu.memory_space<vmem>>) attributes {dimension_semantics = [#tpu.dimension_semantics<parallel>], iteration_bounds = array<i64: 1>, scalar_prefetch = 0 : i64, scratch_operands = 0 : i64, tpu.core_type = #tpu.core_type<tc>, window_params = [{transform_indices = @transform_0, window_bounds = array<i64: 8, 16>}, {transform_indices = @transform_1, window_bounds = array<i64: 8, 4>}, {pipeline_mode = #tpu.pipeline_mode<synchronous>, transform_indices = @transform_2, window_bounds = array<i64: 16, 128>}, {pipeline_mode = #tpu.pipeline_mode<synchronous>, transform_indices = @transform_3, window_bounds = array<i64: 1, 128>}, {pipeline_mode = #tpu.pipeline_mode<synchronous>, transform_indices = @transform_4, window_bounds = array<i64: 128, 128>}, {pipeline_mode = #tpu.pipeline_mode<synchronous>, transform_indices = @transform_5, window_bounds = array<i64: 4, 128>}, {pipeline_mode = #tpu.pipeline_mode<synchronous>, transform_indices = @transform_6, window_bounds = array<i64: 1, 128>}, {pipeline_mode = #tpu.pipeline_mode<synchronous>, transform_indices = @transform_7, window_bounds = array<i64: 128, 128>}, {pipeline_mode = #tpu.pipeline_mode<synchronous>, transform_indices = @transform_8, window_bounds = array<i64: 1, 128>}, {transform_indices = @transform_9, window_bounds = array<i64: 8, 128>}]} {
    %c0 = arith.constant 0 : index
    %c0_0 = arith.constant 0 : index
    %0 = vector.load %arg1[%c0, %c0_0] : memref<8x16xf32, #tpu.memory_space<vmem>>, vector<8x16xf32>
    %1 = arith.truncf %0 : vector<8x16xf32> to vector<8x16xbf16>
    %c0_1 = arith.constant 0 : index
    %c0_2 = arith.constant 0 : index
    %2 = vector.load %arg3[%c0_1, %c0_2] : memref<16x128xbf16, #tpu.memory_space<vmem>>, vector<16x128xbf16>
    %cst = arith.constant dense<0.000000e+00> : vector<8x128xf32>
    %3 = tpu.matmul %1, %2, %cst {dimension_numbers = #tpu.dot_dimension_numbers<[1], [0], [0], [1], [0, 0, 1, 1], [], []>} : vector<8x16xbf16>, vector<16x128xbf16>, vector<8x128xf32> -> vector<8x128xf32>
    %4 = arith.truncf %3 : vector<8x128xf32> to vector<8x128xbf16>
    %c0_3 = arith.constant 0 : index
    %c0_4 = arith.constant 0 : index
    %5 = vector.load %arg4[%c0_3, %c0_4] : memref<1x128xbf16, #tpu.memory_space<vmem>>, vector<1x128xbf16>
    %6 = vector.broadcast %5 : vector<1x128xbf16> to vector<8x128xbf16>
    %7 = arith.addf %4, %6 : vector<8x128xbf16>
    %cst_5 = arith.constant 1.000980e-02 : bf16
    %8 = vector.broadcast %cst_5 : bf16 to vector<8x128xbf16>
    %9 = arith.mulf %8, %7 : vector<8x128xbf16>
    %10 = arith.maximumf %7, %9 : vector<8x128xbf16>
    %c0_6 = arith.constant 0 : index
    %c0_7 = arith.constant 0 : index
    %11 = vector.load %arg5[%c0_6, %c0_7] : memref<128x128xbf16, #tpu.memory_space<vmem>>, vector<128x128xbf16>
    %cst_8 = arith.constant dense<0.000000e+00> : vector<8x128xf32>
    %12 = tpu.matmul %10, %11, %cst_8 {dimension_numbers = #tpu.dot_dimension_numbers<[1], [0], [0], [1], [0, 0, 1, 1], [], []>} : vector<8x128xbf16>, vector<128x128xbf16>, vector<8x128xf32> -> vector<8x128xf32>
    %c0_9 = arith.constant 0 : index
    %c0_10 = arith.constant 0 : index
    %13 = vector.load %arg2[%c0_9, %c0_10] : memref<8x4xf32, #tpu.memory_space<vmem>>, vector<8x4xf32>
    %14 = arith.truncf %13 : vector<8x4xf32> to vector<8x4xbf16>
    %c0_11 = arith.constant 0 : index
    %c0_12 = arith.constant 0 : index
    %15 = vector.load %arg6[%c0_11, %c0_12] : memref<4x128xbf16, #tpu.memory_space<vmem>>, vector<4x128xbf16>
    %cst_13 = arith.constant dense<0.000000e+00> : vector<8x128xf32>
    %16 = tpu.matmul %14, %15, %cst_13 {dimension_numbers = #tpu.dot_dimension_numbers<[1], [0], [0], [1], [0, 0, 1, 1], [], []>} : vector<8x4xbf16>, vector<4x128xbf16>, vector<8x128xf32> -> vector<8x128xf32>
    %17 = arith.addf %12, %16 : vector<8x128xf32>
    %18 = arith.truncf %17 : vector<8x128xf32> to vector<8x128xbf16>
    %c0_14 = arith.constant 0 : index
    %c0_15 = arith.constant 0 : index
    %19 = vector.load %arg7[%c0_14, %c0_15] : memref<1x128xbf16, #tpu.memory_space<vmem>>, vector<1x128xbf16>
    %20 = vector.broadcast %19 : vector<1x128xbf16> to vector<8x128xbf16>
    %21 = arith.addf %18, %20 : vector<8x128xbf16>
    %cst_16 = arith.constant 1.000980e-02 : bf16
    %22 = vector.broadcast %cst_16 : bf16 to vector<8x128xbf16>
    %23 = arith.mulf %22, %21 : vector<8x128xbf16>
    %24 = arith.maximumf %21, %23 : vector<8x128xbf16>
    %c0_17 = arith.constant 0 : index
    %c0_18 = arith.constant 0 : index
    %25 = vector.load %arg8[%c0_17, %c0_18] : memref<128x128xbf16, #tpu.memory_space<vmem>>, vector<128x128xbf16>
    %cst_19 = arith.constant dense<0.000000e+00> : vector<8x128xf32>
    %26 = tpu.matmul %24, %25, %cst_19 {dimension_numbers = #tpu.dot_dimension_numbers<[1], [0], [0], [1], [0, 0, 1, 1], [], []>} : vector<8x128xbf16>, vector<128x128xbf16>, vector<8x128xf32> -> vector<8x128xf32>
    %c0_20 = arith.constant 0 : index
    %c0_21 = arith.constant 0 : index
    %27 = vector.load %arg9[%c0_20, %c0_21] : memref<1x128xf32, #tpu.memory_space<vmem>>, vector<1x128xf32>
    %28 = vector.broadcast %27 : vector<1x128xf32> to vector<8x128xf32>
    %29 = arith.addf %26, %28 : vector<8x128xf32>
    %30 = arith.truncf %29 : vector<8x128xf32> to vector<8x128xbf16>
    %c0_22 = arith.constant 0 : index
    %c0_23 = arith.constant 0 : index
    %31 = vector.load %arg10[%c0_22, %c0_23] : memref<8x128xbf16, #tpu.memory_space<vmem>>, vector<8x128xbf16>
    tpu.vector_store %arg10[%c0_22, %c0_23], %30 {strides = array<i32>} : memref<8x128xbf16, #tpu.memory_space<vmem>>, vector<8x128xbf16>,
    return
  }
  func.func @transform_0(%arg0: i32) -> (i32, i32) {
    %c0_i32 = arith.constant 0 : i32
    %c0_i32_0 = arith.constant 0 : i32
    return %arg0, %c0_i32 : i32, i32
  }
  func.func @transform_1(%arg0: i32) -> (i32, i32) {
    %c0_i32 = arith.constant 0 : i32
    %c0_i32_0 = arith.constant 0 : i32
    return %arg0, %c0_i32 : i32, i32
  }
  func.func @transform_2(%arg0: i32) -> (i32, i32) {
    %c0_i32 = arith.constant 0 : i32
    %c0_i32_0 = arith.constant 0 : i32
    %c0_i32_1 = arith.constant 0 : i32
    return %c0_i32, %c0_i32_0 : i32, i32
  }
  func.func @transform_3(%arg0: i32) -> (i32, i32) {
    %c0_i32 = arith.constant 0 : i32
    %c0_i32_0 = arith.constant 0 : i32
    %c0_i32_1 = arith.constant 0 : i32
    return %c0_i32, %c0_i32_0 : i32, i32
  }
  func.func @transform_4(%arg0: i32) -> (i32, i32) {
    %c0_i32 = arith.constant 0 : i32
    %c0_i32_0 = arith.constant 0 : i32
    %c0_i32_1 = arith.constant 0 : i32
    return %c0_i32, %c0_i32_0 : i32, i32
  }
  func.func @transform_5(%arg0: i32) -> (i32, i32) {
    %c0_i32 = arith.constant 0 : i32
    %c0_i32_0 = arith.constant 0 : i32
    %c0_i32_1 = arith.constant 0 : i32
    return %c0_i32, %c0_i32_0 : i32, i32
  }
  func.func @transform_6(%arg0: i32) -> (i32, i32) {
    %c0_i32 = arith.constant 0 : i32
    %c0_i32_0 = arith.constant 0 : i32
    %c0_i32_1 = arith.constant 0 : i32
    return %c0_i32, %c0_i32_0 : i32, i32
  }
  func.func @transform_7(%arg0: i32) -> (i32, i32) {
    %c0_i32 = arith.constant 0 : i32
    %c0_i32_0 = arith.constant 0 : i32
    %c0_i32_1 = arith.constant 0 : i32
    return %c0_i32, %c0_i32_0 : i32, i32
  }
  func.func @transform_8(%arg0: i32) -> (i32, i32) {
    %c0_i32 = arith.constant 0 : i32
    %c0_i32_0 = arith.constant 0 : i32
    %c0_i32_1 = arith.constant 0 : i32
    return %c0_i32, %c0_i32_0 : i32, i32
  }
  func.func @transform_9(%arg0: i32) -> (i32, i32) {
    %c0_i32 = arith.constant 0 : i32
    %c0_i32_0 = arith.constant 0 : i32
    return %arg0, %c0_i32 : i32, i32
  }
}

</mosaic_0001>

<llo_original>
// kernel: tpu_custom_call.1
$region0: #{tpu_custom_call.1}
  #allocation0 [shape = 'u32[]', space=smem, size = 0x4, offset = 0x4, fixed_abs, tag = 'smem constant byte address 0x4 - core index']
  #allocation1 [shape = 'u32[144,128]{1,0:T(1,128)}', space=vmem, size = 0x12000, scoped, tag = 'internal scratch']
  %s0 = inlined_call_operand.vmem [shape: f32[8,16], index: 0, kind: input, shape index: {}]
  %s1 = inlined_call_operand.vmem [shape: f32[8,4], index: 1, kind: input, shape index: {}]
  %s2 = inlined_call_operand.hbm [shape: bf16[16,128], index: 2, kind: input, shape index: {}]
  %s3 = inlined_call_operand.vmem [shape: bf16[1,128], index: 3, kind: input, shape index: {}]
  %s4 = inlined_call_operand.hbm [shape: bf16[128,128], index: 4, kind: input, shape index: {}]
  %s5 = inlined_call_operand.vmem [shape: bf16[4,128], index: 5, kind: input, shape index: {}]
  %s6 = inlined_call_operand.vmem [shape: bf16[1,128], index: 6, kind: input, shape index: {}]
  %s7 = inlined_call_operand.hbm [shape: bf16[128,128], index: 7, kind: input, shape index: {}]
  %s8 = inlined_call_operand.vmem [shape: f32[1,128], index: 8, kind: input, shape index: {}]
  %s9 = inlined_call_operand.hbm [shape: bf16[8,128], index: 9, kind: output, shape index: {}]
  %s10 = sld [smem:[#allocation0]]
  $region58: #{tpu_custom_call.1} parent=0
    _
  %s12 = ssub.s32 1, %s10
  %s13 = scalar_select 0, %s12, %s10
  $region1: #{tpu_custom_call.1} parent=0
    #allocation2 [shape = 'u8[4096]{0}', space=vmem, size = 0x1000, scoped, tag = 'input window, operand 2, single buffered']
    #allocation3 [shape = 's32[1]{0}', space=sflag, size = 0x4, scoped, tag = 'scoped memory for tpu_custom_call.1']
    #allocation4 [shape = 's32[1]{0}', space=sflag, size = 0x4, scoped, tag = 'scoped memory for tpu_custom_call.1']
    #allocation5 [shape = 'u8[32768]{0}', space=vmem, size = 0x8000, scoped, tag = 'input window, operand 4, single buffered']
    #allocation6 [shape = 's32[1]{0}', space=sflag, size = 0x4, scoped, tag = 'scoped memory for tpu_custom_call.1']
    #allocation7 [shape = 'u8[32768]{0}', space=vmem, size = 0x8000, scoped, tag = 'input window, operand 7, single buffered']
    #allocation8 [shape = 'u8[2048]{0}', space=vmem, size = 0x800, scoped, tag = 'output window, operand 0, single buffered']
    %14 = vsyncpa [#allocation3], 0
    %15 = vsyncpa [#allocation6], 0
    %16 = vsyncpa [#allocation4], 0
    // Predicated region
    $region2: #{tpu_custom_call.1} parent=1 // pred_check
      _
    $region3: #{tpu_custom_call.1} parent=1 // pred_check_branch
      %18 = sbr.rel (0) target = $region5
    $region4: #{tpu_custom_call.1} parent=1 // pred_region
      _
    $region5: #{tpu_custom_call.1} parent=1 // pred_fallthru
      _
    // Predicated region
    $region6: #{tpu_custom_call.1} parent=1 // pred_check
      _
    $region7: #{tpu_custom_call.1} parent=1 // pred_check_branch
      %20 = sbr.rel (0) target = $region9
    $region8: #{tpu_custom_call.1} parent=1 // pred_region
      _
    $region9: #{tpu_custom_call.1} parent=1 // pred_fallthru
      _
    // Predicated region
    $region10: #{tpu_custom_call.1} parent=1 // pred_check
      _
    $region11: #{tpu_custom_call.1} parent=1 // pred_check_branch
      %22 = sbr.rel (0) target = $region13
    $region12: #{tpu_custom_call.1} parent=1 // pred_region
      %s24 = ssub.s32 128, 128
      %25 = vsyncadd [#allocation3], %s24
      %s26 = sshll.u32 [#allocation2], 4
      %s27 = int_to_ptr.vmem [resolvable:$true] %s26
      %32 = dma.hbm_to_vmem [thread:$0]  %s2, 128, %s27, [#allocation3], 64, 64, 4
    $region13: #{tpu_custom_call.1} parent=1 // pred_fallthru
      _
    // Predicated region
    $region14: #{tpu_custom_call.1} parent=1 // pred_check
      _
    $region15: #{tpu_custom_call.1} parent=1 // pred_check_branch
      %34 = sbr.rel (0) target = $region17
    $region16: #{tpu_custom_call.1} parent=1 // pred_region
      _
    $region17: #{tpu_custom_call.1} parent=1 // pred_fallthru
      _
    // Predicated region
    $region18: #{tpu_custom_call.1} parent=1 // pred_check
      _
    $region19: #{tpu_custom_call.1} parent=1 // pred_check_branch
      %36 = sbr.rel (0) target = $region21
    $region20: #{tpu_custom_call.1} parent=1 // pred_region
      %s38 = ssub.s32 1024, 1024
      %39 = vsyncadd [#allocation6], %s38
      %s40 = sshll.u32 [#allocation5], 4
      %s41 = int_to_ptr.vmem [resolvable:$true] %s40
      %46 = dma.hbm_to_vmem [thread:$0]  %s4, 1024, %s41, [#allocation6], 64, 64, 4
    $region21: #{tpu_custom_call.1} parent=1 // pred_fallthru
      _
    // Predicated region
    $region22: #{tpu_custom_call.1} parent=1 // pred_check
      _
    $region23: #{tpu_custom_call.1} parent=1 // pred_check_branch
      %48 = sbr.rel (0) target = $region25
    $region24: #{tpu_custom_call.1} parent=1 // pred_region
      _
    $region25: #{tpu_custom_call.1} parent=1 // pred_fallthru
      _
    // Predicated region
    $region26: #{tpu_custom_call.1} parent=1 // pred_check
      _
    $region27: #{tpu_custom_call.1} parent=1 // pred_check_branch
      %50 = sbr.rel (0) target = $region29
    $region28: #{tpu_custom_call.1} parent=1 // pred_region
      _
    $region29: #{tpu_custom_call.1} parent=1 // pred_fallthru
      _
    // Predicated region
    $region30: #{tpu_custom_call.1} parent=1 // pred_check
      _
    $region31: #{tpu_custom_call.1} parent=1 // pred_check_branch
      %52 = sbr.rel (0) target = $region33
    $region32: #{tpu_custom_call.1} parent=1 // pred_region
      %s54 = ssub.s32 1024, 1024
      %55 = vsyncadd [#allocation6], %s54
      %s56 = sshll.u32 [#allocation7], 4
      %s57 = int_to_ptr.vmem [resolvable:$true] %s56
      %62 = dma.hbm_to_vmem [thread:$0]  %s7, 1024, %s57, [#allocation6], 64, 64, 4
    $region33: #{tpu_custom_call.1} parent=1 // pred_fallthru
      _
    // Predicated region
    $region34: #{tpu_custom_call.1} parent=1 // pred_check
      _
    $region35: #{tpu_custom_call.1} parent=1 // pred_check_branch
      %64 = sbr.rel (0) target = $region37
    $region36: #{tpu_custom_call.1} parent=1 // pred_region
      _
    $region37: #{tpu_custom_call.1} parent=1 // pred_fallthru
      _
    // Predicated region
    $region38: #{tpu_custom_call.1} parent=1 // pred_check
      _
    $region39: #{tpu_custom_call.1} parent=1 // pred_check_branch
      %66 = sbr.rel (0) target = $region41
    $region40: #{tpu_custom_call.1} parent=1 // pred_region
      %67 = dma.done [#allocation3], 128
    $region41: #{tpu_custom_call.1} parent=1 // pred_fallthru
      _
    // Predicated region
    $region42: #{tpu_custom_call.1} parent=1 // pred_check
      _
    $region43: #{tpu_custom_call.1} parent=1 // pred_check_branch
      %69 = sbr.rel (0) target = $region45
    $region44: #{tpu_custom_call.1} parent=1 // pred_region
      %70 = dma.done [#allocation6], 1024
    $region45: #{tpu_custom_call.1} parent=1 // pred_fallthru
      _
    // Predicated region
    $region46: #{tpu_custom_call.1} parent=1 // pred_check
      _
    $region47: #{tpu_custom_call.1} parent=1 // pred_check_branch
      %72 = sbr.rel (0) target = $region49
    $region48: #{tpu_custom_call.1} parent=1 // pred_region
      %73 = dma.done [#allocation6], 1024
    $region49: #{tpu_custom_call.1} parent=1 // pred_fallthru
      _
    %v76 = vld [vmem:[%s0] sm:$0xff]
    %v77 = vpack.c.bf16 %v76, %v76
    %v78 = vld [vmem:[#allocation2] sm:$0xf]
    %v79 = vld [vmem:[#allocation2 + $0x4] sm:$0xf]
    %v82 = vunpack.c.l.b16 %v78
    %v83 = vunpack.c.l.b16 %v79
    %v84 = vpack.c.b16 %v83, %v82
    %vm86 = vcmask 130048
    %v88 = vsel %vm86, %v77, 0
    %90 = vmatprep.subr.bf16.mxu0 0
    %91 = vmatpush1.bf16.msra.mxu0 0
    %92 = vmatprep.subr.bf16.mxu0 0
    %93 = vmatpush1.bf16.msra.mxu0 0
    %94 = vmatprep.subr.bf16.mxu0 0
    %95 = vmatpush1.bf16.msra.mxu0 0
    %96 = vmatprep.subr.bf16.mxu0 0
    %97 = vmatpush1.bf16.msra.mxu0 0
    %98 = vmatprep.subr.bf16.mxu0 0
    %99 = vmatpush1.bf16.msra.mxu0 0
    %100 = vmatprep.subr.bf16.mxu0 0
    %101 = vmatpush1.bf16.msra.mxu0 0
    %102 = vmatprep.subr.bf16.mxu0 0
    %103 = vmatpush1.bf16.msra.mxu0 0
    %104 = vmatprep.subr.bf16.mxu0 0
    %105 = vmatpush1.bf16.msra.mxu0 %v84
    %106 = vmatprep.subr.bf16.mxu0 0
    %107 = vmatpush2.bf16.msra.mxu0 0
    %108 = vmatprep.subr.bf16.mxu0 0
    %109 = vmatpush2.bf16.msra.mxu0 0
    %110 = vmatprep.subr.bf16.mxu0 0
    %111 = vmatpush2.bf16.msra.mxu0 0
    %112 = vmatprep.subr.bf16.mxu0 0
    %113 = vmatpush2.bf16.msra.mxu0 0
    %114 = vmatprep.subr.bf16.mxu0 0
    %115 = vmatpush2.bf16.msra.mxu0 0
    %116 = vmatprep.subr.bf16.mxu0 0
    %117 = vmatpush2.bf16.msra.mxu0 0
    %118 = vmatprep.subr.bf16.mxu0 0
    %119 = vmatpush2.bf16.msra.mxu0 0
    %120 = vmatprep.subr.bf16.mxu0 0
    %121 = vmatpush2.bf16.msra.mxu0 0
    %122 = vmatprep.mubr.bf16.mxu0 0
    %123 = vmatmul.mubr.bf16.gmra.mxu0 %v88
    %v124 = vpop.f32.mrf.mxu0
    %v125 = vadd.f32 0.0, %v124
    %v126 = vpop.f32.mrf.mxu0
    %v127 = vpop.f32.mrf.mxu0
    %v128 = vpop.f32.mrf.mxu0
    %129 = vdwg.mxu0
    %v130 = vpack.c.bf16 %v125, %v125
    %v131 = vld [vmem:[%s3] sm:$0x1]
    %v133 = vpack.i.b16 %v131, %v131
    %v135 = vlaneseq
    %v136 = vshrl.u32 %v135, 7
    %v137 = vsub.s32 0, %v136
    %v138 = vrot.slane %v133, %v137
    %v139 = vadd.bf16 %v130, %v138
    %v140 = vmul.bf16 %v139, 1009007652
    %v141 = vmax.bf16 %v139, %v140
    %v142 = vld [vmem:[#allocation5] sm:$0xf]
    %v143 = vld [vmem:[#allocation5 + $0x4] sm:$0xf]
    %v144 = vld [vmem:[#allocation5 + $0x8] sm:$0xf]
    %v145 = vld [vmem:[#allocation5 + $0xc] sm:$0xf]
    %v146 = vld [vmem:[#allocation5 + $0x10] sm:$0xf]
    %v147 = vld [vmem:[#allocation5 + $0x14] sm:$0xf]
    %v148 = vld [vmem:[#allocation5 + $0x18] sm:$0xf]
    %v149 = vld [vmem:[#allocation5 + $0x1c] sm:$0xf]
    %v150 = vld [vmem:[#allocation5 + $0x20] sm:$0xf]
    %v151 = vld [vmem:[#allocation5 + $0x24] sm:$0xf]
    %v152 = vld [vmem:[#allocation5 + $0x28] sm:$0xf]
    %v153 = vld [vmem:[#allocation5 + $0x2c] sm:$0xf]
    %v154 = vld [vmem:[#allocation5 + $0x30] sm:$0xf]
    %v155 = vld [vmem:[#allocation5 + $0x34] sm:$0xf]
    %v156 = vld [vmem:[#allocation5 + $0x38] sm:$0xf]
    %v157 = vld [vmem:[#allocation5 + $0x3c] sm:$0xf]
    %v158 = vld [vmem:[%s1] sm:$0xff]
    %v159 = vpack.c.bf16 %v158, %v158
    %v160 = vld [vmem:[%s5] sm:$0x3]
    %vm161 = vcmask 31744
    %v163 = vsel %vm161, %v159, 0
    %vm165 = vcmask 1041408
    %v167 = vsel %vm165, %v160, 0
    %169 = vmatprep.subr.bf16.mxu0 0
    %170 = vmatpush1.bf16.msra.mxu0 0
    %171 = vmatprep.subr.bf16.mxu0 0
    %172 = vmatpush1.bf16.msra.mxu0 0
    %173 = vmatprep.subr.bf16.mxu0 0
    %174 = vmatpush1.bf16.msra.mxu0 0
    %175 = vmatprep.subr.bf16.mxu0 0
    %176 = vmatpush1.bf16.msra.mxu0 0
    %177 = vmatprep.subr.bf16.mxu0 0
    %178 = vmatpush1.bf16.msra.mxu0 0
    %179 = vmatprep.subr.bf16.mxu0 0
    %180 = vmatpush1.bf16.msra.mxu0 0
    %181 = vmatprep.subr.bf16.mxu0 0
    %182 = vmatpush1.bf16.msra.mxu0 0
    %183 = vmatprep.subr.bf16.mxu0 0
    %184 = vmatpush1.bf16.msra.mxu0 %v167
    %185 = vmatprep.subr.bf16.mxu0 0
    %186 = vmatpush2.bf16.msra.mxu0 0
    %187 = vmatprep.subr.bf16.mxu0 0
    %188 = vmatpush2.bf16.msra.mxu0 0
    %189 = vmatprep.subr.bf16.mxu0 0
    %190 = vmatpush2.bf16.msra.mxu0 0
    %191 = vmatprep.subr.bf16.mxu0 0
    %192 = vmatpush2.bf16.msra.mxu0 0
    %193 = vmatprep.subr.bf16.mxu0 0
    %194 = vmatpush2.bf16.msra.mxu0 0
    %195 = vmatprep.subr.bf16.mxu0 0
    %196 = vmatpush2.bf16.msra.mxu0 0
    %197 = vmatprep.subr.bf16.mxu0 0
    %198 = vmatpush2.bf16.msra.mxu0 0
    %199 = vmatprep.subr.bf16.mxu0 0
    %200 = vmatpush2.bf16.msra.mxu0 0
    %201 = vmatprep.mubr.bf16.mxu0 0
    %202 = vmatmul.mubr.bf16.gmra.mxu0 %v163
    %v203 = vpop.f32.mrf.mxu0
    %v204 = vadd.f32 0.0, %v203
    %v205 = vpop.f32.mrf.mxu0
    %v206 = vpop.f32.mrf.mxu0
    %v207 = vpop.f32.mrf.mxu0
    %208 = vdwg.mxu0
    %v225 = vunpack.c.l.b16 %v142
    %v226 = vunpack.c.l.b16 %v143
    %v227 = vunpack.c.l.b16 %v144
    %v228 = vunpack.c.l.b16 %v145
    %v229 = vunpack.c.l.b16 %v146
    %v230 = vunpack.c.l.b16 %v147
    %v231 = vunpack.c.l.b16 %v148
    %v232 = vunpack.c.l.b16 %v149
    %v233 = vunpack.c.l.b16 %v150
    %v234 = vunpack.c.l.b16 %v151
    %v235 = vunpack.c.l.b16 %v152
    %v236 = vunpack.c.l.b16 %v153
    %v237 = vunpack.c.l.b16 %v154
    %v238 = vunpack.c.l.b16 %v155
    %v239 = vunpack.c.l.b16 %v156
    %v240 = vunpack.c.l.b16 %v157
    %v241 = vpack.c.b16 %v226, %v225
    %v242 = vpack.c.b16 %v228, %v227
    %v243 = vpack.c.b16 %v230, %v229
    %v244 = vpack.c.b16 %v232, %v231
    %v245 = vpack.c.b16 %v234, %v233
    %v246 = vpack.c.b16 %v236, %v235
    %v247 = vpack.c.b16 %v238, %v237
    %v248 = vpack.c.b16 %v240, %v239
    %257 = vmatprep.subr.bf16.mxu0 0
    %258 = vmatpush1.bf16.msra.mxu0 %v248
    %259 = vmatprep.subr.bf16.mxu0 0
    %260 = vmatpush1.bf16.msra.mxu0 %v247
    %261 = vmatprep.subr.bf16.mxu0 0
    %262 = vmatpush1.bf16.msra.mxu0 %v246
    %263 = vmatprep.subr.bf16.mxu0 0
    %264 = vmatpush1.bf16.msra.mxu0 %v245
    %265 = vmatprep.subr.bf16.mxu0 0
    %266 = vmatpush1.bf16.msra.mxu0 %v244
    %267 = vmatprep.subr.bf16.mxu0 0
    %268 = vmatpush1.bf16.msra.mxu0 %v243
    %269 = vmatprep.subr.bf16.mxu0 0
    %270 = vmatpush1.bf16.msra.mxu0 %v242
    %271 = vmatprep.subr.bf16.mxu0 0
    %272 = vmatpush1.bf16.msra.mxu0 %v241
    %273 = vmatprep.subr.bf16.mxu0 0
    %274 = vmatpush2.bf16.msra.mxu0 0
    %275 = vmatprep.subr.bf16.mxu0 0
    %276 = vmatpush2.bf16.msra.mxu0 0
    %277 = vmatprep.subr.bf16.mxu0 0
    %278 = vmatpush2.bf16.msra.mxu0 0
    %279 = vmatprep.subr.bf16.mxu0 0
    %280 = vmatpush2.bf16.msra.mxu0 0
    %281 = vmatprep.subr.bf16.mxu0 0
    %282 = vmatpush2.bf16.msra.mxu0 0
    %283 = vmatprep.subr.bf16.mxu0 0
    %284 = vmatpush2.bf16.msra.mxu0 0
    %285 = vmatprep.subr.bf16.mxu0 0
    %286 = vmatpush2.bf16.msra.mxu0 0
    %287 = vmatprep.subr.bf16.mxu0 0
    %288 = vmatpush2.bf16.msra.mxu0 0
    %289 = vmatprep.mubr.bf16.mxu0 0
    %290 = vmatmul.mubr.bf16.gmra.mxu0 %v141
    %v291 = vpop.f32.mrf.mxu0
    %v292 = vadd.f32 %v204, %v291
    %v293 = vpop.f32.mrf.mxu0
    %v294 = vpop.f32.mrf.mxu0
    %v295 = vpop.f32.mrf.mxu0
    %296 = vdwg.mxu0
    %v297 = vpack.c.bf16 %v292, %v292
    %v298 = vld [vmem:[%s6] sm:$0x1]
    %v300 = vpack.i.b16 %v298, %v298
    %v302 = vlaneseq
    %v303 = vshrl.u32 %v302, 7
    %v304 = vsub.s32 0, %v303
    %v305 = vrot.slane %v300, %v304
    %v306 = vadd.bf16 %v297, %v305
    %v307 = vmul.bf16 %v306, 1009007652
    %v308 = vmax.bf16 %v306, %v307
    %v309 = vld [vmem:[#allocation7] sm:$0xf]
    %v310 = vld [vmem:[#allocation7 + $0x4] sm:$0xf]
    %v311 = vld [vmem:[#allocation7 + $0x8] sm:$0xf]
    %v312 = vld [vmem:[#allocation7 + $0xc] sm:$0xf]
    %v313 = vld [vmem:[#allocation7 + $0x10] sm:$0xf]
    %v314 = vld [vmem:[#allocation7 + $0x14] sm:$0xf]
    %v315 = vld [vmem:[#allocation7 + $0x18] sm:$0xf]
    %v316 = vld [vmem:[#allocation7 + $0x1c] sm:$0xf]
    %v317 = vld [vmem:[#allocation7 + $0x20] sm:$0xf]
    %v318 = vld [vmem:[#allocation7 + $0x24] sm:$0xf]
    %v319 = vld [vmem:[#allocation7 + $0x28] sm:$0xf]
    %v320 = vld [vmem:[#allocation7 + $0x2c] sm:$0xf]
    %v321 = vld [vmem:[#allocation7 + $0x30] sm:$0xf]
    %v322 = vld [vmem:[#allocation7 + $0x34] sm:$0xf]
    %v323 = vld [vmem:[#allocation7 + $0x38] sm:$0xf]
    %v324 = vld [vmem:[#allocation7 + $0x3c] sm:$0xf]
    %v325 = vld [vmem:[%s8] sm:$0x1]
    %v327 = vlaneseq
    %v328 = vshrl.u32 %v327, 7
    %v329 = vsub.s32 0, %v328
    %v330 = vrot.slane %v325, %v329
    %v348 = vunpack.c.l.b16 %v309
    %v349 = vunpack.c.l.b16 %v310
    %v350 = vunpack.c.l.b16 %v311
    %v351 = vunpack.c.l.b16 %v312
    %v352 = vunpack.c.l.b16 %v313
    %v353 = vunpack.c.l.b16 %v314
    %v354 = vunpack.c.l.b16 %v315
    %v355 = vunpack.c.l.b16 %v316
    %v356 = vunpack.c.l.b16 %v317
    %v357 = vunpack.c.l.b16 %v318
    %v358 = vunpack.c.l.b16 %v319
    %v359 = vunpack.c.l.b16 %v320
    %v360 = vunpack.c.l.b16 %v321
    %v361 = vunpack.c.l.b16 %v322
    %v362 = vunpack.c.l.b16 %v323
    %v363 = vunpack.c.l.b16 %v324
    %v364 = vpack.c.b16 %v349, %v348
    %v365 = vpack.c.b16 %v351, %v350
    %v366 = vpack.c.b16 %v353, %v352
    %v367 = vpack.c.b16 %v355, %v354
    %v368 = vpack.c.b16 %v357, %v356
    %v369 = vpack.c.b16 %v359, %v358
    %v370 = vpack.c.b16 %v361, %v360
    %v371 = vpack.c.b16 %v363, %v362
    %380 = vmatprep.subr.bf16.mxu0 0
    %381 = vmatpush1.bf16.msra.mxu0 %v371
    %382 = vmatprep.subr.bf16.mxu0 0
    %383 = vmatpush1.bf16.msra.mxu0 %v370
    %384 = vmatprep.subr.bf16.mxu0 0
    %385 = vmatpush1.bf16.msra.mxu0 %v369
    %386 = vmatprep.subr.bf16.mxu0 0
    %387 = vmatpush1.bf16.msra.mxu0 %v368
    %388 = vmatprep.subr.bf16.mxu0 0
    %389 = vmatpush1.bf16.msra.mxu0 %v367
    %390 = vmatprep.subr.bf16.mxu0 0
    %391 = vmatpush1.bf16.msra.mxu0 %v366
    %392 = vmatprep.subr.bf16.mxu0 0
    %393 = vmatpush1.bf16.msra.mxu0 %v365
    %394 = vmatprep.subr.bf16.mxu0 0
    %395 = vmatpush1.bf16.msra.mxu0 %v364
    %396 = vmatprep.subr.bf16.mxu0 0
    %397 = vmatpush2.bf16.msra.mxu0 0
    %398 = vmatprep.subr.bf16.mxu0 0
    %399 = vmatpush2.bf16.msra.mxu0 0
    %400 = vmatprep.subr.bf16.mxu0 0
    %401 = vmatpush2.bf16.msra.mxu0 0
    %402 = vmatprep.subr.bf16.mxu0 0
    %403 = vmatpush2.bf16.msra.mxu0 0
    %404 = vmatprep.subr.bf16.mxu0 0
    %405 = vmatpush2.bf16.msra.mxu0 0
    %406 = vmatprep.subr.bf16.mxu0 0
    %407 = vmatpush2.bf16.msra.mxu0 0
    %408 = vmatprep.subr.bf16.mxu0 0
    %409 = vmatpush2.bf16.msra.mxu0 0
    %410 = vmatprep.subr.bf16.mxu0 0
    %411 = vmatpush2.bf16.msra.mxu0 0
    %412 = vmatprep.mubr.bf16.mxu0 0
    %413 = vmatmul.mubr.bf16.gmra.mxu0 %v308
    %v414 = vpop.f32.mrf.mxu0
    %v415 = vadd.f32 %v330, %v414
    %v416 = vpop.f32.mrf.mxu0
    %v417 = vpop.f32.mrf.mxu0
    %v418 = vpop.f32.mrf.mxu0
    %419 = vdwg.mxu0
    %v420 = vpack.c.bf16 %v415, %v415
    %421 = vst [vmem:[#allocation8] sm:$0xf] %v420
    // Predicated region
    $region50: #{tpu_custom_call.1} parent=1 // pred_check
      _
    $region51: #{tpu_custom_call.1} parent=1 // pred_check_branch
      %423 = sbr.rel (0) target = $region53
    $region52: #{tpu_custom_call.1} parent=1 // pred_region
      %s425 = ssub.s32 64, 64
      %426 = vsyncadd [#allocation4], %s425
      %s428 = sshll.u32 [#allocation8], 4
      %s429 = int_to_ptr.vmem [resolvable:$true] %s428
      %431 = dma.vmem_to_hbm [thread:$0]  %s429, 64, %s9, [#allocation4]
    $region53: #{tpu_custom_call.1} parent=1 // pred_fallthru
      _
    // Predicated region
    $region54: #{tpu_custom_call.1} parent=1 // pred_check
      _
    $region55: #{tpu_custom_call.1} parent=1 // pred_check_branch
      %433 = sbr.rel (0) target = $region57
    $region56: #{tpu_custom_call.1} parent=1 // pred_region
      %434 = dma.done [#allocation4], 64
    $region57: #{tpu_custom_call.1} parent=1 // pred_fallthru
      _
    %435 = vsyncpa [#allocation3], 1
    %436 = vsyncpa [#allocation6], 1
    %437 = vsyncpa [#allocation4], 1

</llo_original>
